<compile_context>
chip_gen: v7x
topology: tpu7x:2x2x1
jax: 0.10.0
libtpu: 0.0.40
codegen_flags: <defaults>
</compile_context>

<pallas_src>
import functools

import numpy as np
import jax
import jax.numpy as jnp
from jax.experimental import pallas as pl
from jax.experimental.pallas import tpu as pltpu

_F32_MIN = float(jnp.finfo(jnp.float32).min)   # mask fill (not -1e30; see review)
_VMEM_LIMIT = 32 * 1024 * 1024                 # explicit scoped-VMEM limit
_TEMP_BUDGET = 12 * 1024 * 1024                # budget for [n_pad, TILE_E] temporaries


def _round_up(x: int, m: int) -> int:
    return (x + m - 1) // m * m


def _cdiv(a: int, b: int) -> int:
    return -(-a // b)


# --------------------------------------------------------------------------
# Pass 1: per-node online log-sum-exp accumulated across edge tiles.
# --------------------------------------------------------------------------
def _lse_accumulate_kernel(inv_t_ref, row_ref, vals_ref, lse_ref, m_scr, s_scr,
                           *, n_pad, tile_e):
    g = pl.program_id(0)

    @pl.when(g == 0)
    def _init():
        m_scr[...] = jnp.full_like(m_scr, _F32_MIN)
        s_scr[...] = jnp.zeros_like(s_scr)

    inv_t = inv_t_ref[0]                       # scalar 1/temp (SMEM prefetch)
    row = row_ref[0]                           # [1, tile_e] i32 (-1 == padding)
    vals = vals_ref[0] * inv_t                 # [1, tile_e] f32

    node_ids = jax.lax.broadcasted_iota(jnp.int32, (n_pad, tile_e), 0)
    member = row == node_ids                   # [n_pad, tile_e] (implicit bcast)
    masked = jnp.where(member, vals, _F32_MIN)

    tile_max = jnp.max(masked, axis=1, keepdims=True)      # [n_pad, 1]
    m_old = m_scr[...]
    m_new = jnp.maximum(m_old, tile_max)

    # exp(masked - m_new) is exactly 0 on non-member lanes of any node that
    # has (or ever had) an edge; nodes with no edges at all accumulate finite
    # garbage that is never gathered (one-hot weight 0 in pass 2).
    ex = jnp.exp(masked - m_new)                            # [n_pad, tile_e]
    tile_sum = jnp.sum(ex, axis=1, keepdims=True)           # [n_pad, 1]

    s_scr[...] = s_scr[...] * jnp.exp(m_old - m_new) + tile_sum
    m_scr[...] = m_new

    @pl.when(g == pl.num_programs(0) - 1)
    def _finalize():
        lse_ref[...] = m_scr[...] + jnp.log(s_scr[...])


# --------------------------------------------------------------------------
# Pass 2: scatter lse to edges via one-hot MXU matmul and normalize.
# --------------------------------------------------------------------------
def _normalize_kernel(inv_t_ref, lse_ref, row_ref, vals_ref, out_ref,
                      *, n_pad, tile_e):
    inv_t = inv_t_ref[0]
    row = row_ref[0]                           # [1, tile_e]
    vals = vals_ref[0] * inv_t                 # [1, tile_e]

    node_ids = jax.lax.broadcasted_iota(jnp.int32, (n_pad, tile_e), 0)
    onehot = (row == node_ids).astype(jnp.float32)          # exact f32 one-hot

    # [1, n_pad] @ [n_pad, tile_e] -> [1, tile_e]  (runs on the idle MXU)
    edge_lse = jnp.dot(lse_ref[...], onehot,
                       preferred_element_type=jnp.float32)

    out = jnp.exp(vals - edge_lse)
    out_ref[0] = jnp.where(row >= 0, out, 0.0)              # zero padded lanes


# --------------------------------------------------------------------------
# Host wrapper
# --------------------------------------------------------------------------
def segment_softmax_pallas(bandwidth, row, num_nodes, temp, tile_e=None):
    """bandwidth: [E] f32, row: [E] i32 in [0, num_nodes). Returns [E] f32."""
    e = int(bandwidth.shape[0])
    n_pad = _round_up(max(int(num_nodes), 1), 128)          # MXU-friendly pad

    if tile_e is None:
        cap = _TEMP_BUDGET // (n_pad * 4 * 6)                # ~6 live N x T f32 temps
        cap = max(128, min(8192, (cap // 128) * 128))
        tile_e = min(cap, _round_up(max(e, 1), 128))
    tile_e = max(128, _round_up(int(tile_e), 128))

    g = max(1, _cdiv(max(e, 1), tile_e))
    e_pad = g * tile_e

    vals_p = jnp.pad(bandwidth.astype(jnp.float32), (0, e_pad - e)
                     ).reshape(g, 1, tile_e)
    rows_p = jnp.pad(row.astype(jnp.int32), (0, e_pad - e),
                     constant_values=-1).reshape(g, 1, tile_e)
    inv_t = jnp.asarray([1.0 / float(temp)], jnp.float32)

    # ---- pass 1: per-node lse --------------------------------------------
    lse_col = pl.pallas_call(
        functools.partial(_lse_accumulate_kernel, n_pad=n_pad, tile_e=tile_e),
        out_shape=jax.ShapeDtypeStruct((n_pad, 1), jnp.float32),
        grid_spec=pltpu.PrefetchScalarGridSpec(
            num_scalar_prefetch=1,
            grid=(g,),
            in_specs=[
                pl.BlockSpec((1, 1, tile_e), lambda i, s: (i, 0, 0)),   # rows
                pl.BlockSpec((1, 1, tile_e), lambda i, s: (i, 0, 0)),   # vals
            ],
            out_specs=pl.BlockSpec((n_pad, 1), lambda i, s: (0, 0)),
            scratch_shapes=[pltpu.VMEM((n_pad, 1), jnp.float32),        # running max
                            pltpu.VMEM((n_pad, 1), jnp.float32)]),      # running sum
        compiler_params=pltpu.CompilerParams(
            dimension_semantics=("arbitrary",),
            vmem_limit_bytes=_VMEM_LIMIT),
    )(inv_t, rows_p, vals_p)

    lse_row = lse_col.reshape(1, n_pad)

    # ---- pass 2: normalize (independent per edge tile) -------------------
    out_p = pl.pallas_call(
        functools.partial(_normalize_kernel, n_pad=n_pad, tile_e=tile_e),
        out_shape=jax.ShapeDtypeStruct((g, 1, tile_e), jnp.float32),
        grid_spec=pltpu.PrefetchScalarGridSpec(
            num_scalar_prefetch=1,
            grid=(g,),
            in_specs=[
                pl.BlockSpec((1, n_pad), lambda i, s: (0, 0)),          # lse
                pl.BlockSpec((1, 1, tile_e), lambda i, s: (i, 0, 0)),   # rows
                pl.BlockSpec((1, 1, tile_e), lambda i, s: (i, 0, 0)),   # vals
            ],
            out_specs=pl.BlockSpec((1, 1, tile_e), lambda i, s: (i, 0, 0))),
        compiler_params=pltpu.CompilerParams(
            dimension_semantics=("parallel",),
            vmem_limit_bytes=_VMEM_LIMIT),
    )(inv_t, lse_row, rows_p, vals_p)

    return out_p.reshape(-1)[:e]


def to_undirected_np(edge_index, num_nodes):
    """Add reverse edges, coalesce (sort by (row, col), drop duplicates)."""
    edge_index = np.asarray(edge_index)
    row = np.concatenate([edge_index[0], edge_index[1]])
    col = np.concatenate([edge_index[1], edge_index[0]])
    keys = np.unique(row.astype(np.int64) * num_nodes + col.astype(np.int64))
    return np.stack([keys // num_nodes, keys % num_nodes]).astype(np.int32)


def bandwidth_mask_forward(edge_index_np, temp, num_nodes, key,
                           undirected=True, tile_e=None):
    """Mirrors BandwidthMask.forward: returns per-edge softmax bandwidth."""
    edge_index_np = np.asarray(edge_index_np)
    if undirected:
        edge_index_np = to_undirected_np(edge_index_np, num_nodes)
    e = edge_index_np.shape[1]
    # randn_like(e_ids, dtype=float32): deterministic synthetic init.
    bandwidth = jax.random.normal(key, (e,), dtype=jnp.float32)
    row = jnp.asarray(edge_index_np[0], jnp.int32)   # sorted rows (sparse storage row)
    out = segment_softmax_pallas(bandwidth, row, num_nodes, temp, tile_e=tile_e)
    return out, bandwidth, row


def _reference_segment_softmax(bandwidth, row, num_nodes, temp):
    v = bandwidth / temp
    seg_max = jax.ops.segment_max(v, row, num_segments=num_nodes)
    ex = jnp.exp(v - seg_max[row])
    seg_sum = jax.ops.segment_sum(ex, row, num_segments=num_nodes)
    return ex / (seg_sum[row] + 1e-16)


def _check(out, bandwidth, row, num_nodes, temp):
    ref = _reference_segment_softmax(bandwidth, row, num_nodes, temp)
    np.testing.assert_allclose(np.asarray(out), np.asarray(ref),
                               rtol=1e-5, atol=1e-6)
    sums = np.asarray(jax.ops.segment_sum(out, row, num_segments=num_nodes))
    active = np.unique(np.asarray(row))
    np.testing.assert_allclose(sums[active], np.ones_like(sums[active]), rtol=1e-5)


if __name__ == "__main__":
    key = jax.random.PRNGKey(0)
    k1, k2, k3 = jax.random.split(key, 3)

    # Test 1: small directed graph, single edge tile (G == 1).
    num_nodes = 8
    temp = 0.5
    edge_index = np.array(
        [[0, 1, 1, 2, 3, 4, 5, 6, 0, 2],
         [1, 0, 2, 3, 4, 5, 6, 7, 3, 5]], dtype=np.int32)
    out, bw, row = bandwidth_mask_forward(edge_index, temp, num_nodes, k1,
                                          undirected=True)
    out = jax.block_until_ready(out)
    _check(out, bw, row, num_nodes, temp)

    # Test 2: random graph with a forced small tile so the multi-tile
    # (grid > 1) online-lse accumulation path is exercised.
    num_nodes2 = 32
    temp2 = 0.25
    ei2 = np.asarray(jax.random.randint(k2, (2, 300), 0, num_nodes2),
                     dtype=np.int32)
    out2, bw2, row2 = bandwidth_mask_forward(ei2, temp2, num_nodes2, k3,
                                             undirected=True, tile_e=128)
    out2 = jax.block_until_ready(out2)
    _check(out2, bw2, row2, num_nodes2, temp2)

    print("KERNEL_OK")
</pallas_src>

<mosaic_0001>
module attributes {stable_mosaic.version = 11 : i64} {
  func.func @_lse_accumulate_kernel(%arg0: i32, %arg1: memref<1xf32, #tpu.memory_space<smem>>, %arg2: memref<1x1x128xi32, #tpu.memory_space<vmem>>, %arg3: memref<1x1x128xf32, #tpu.memory_space<vmem>>, %arg4: memref<128x1xf32, #tpu.memory_space<vmem>>, %arg5: memref<128x1xf32, #tpu.memory_space<vmem>>, %arg6: memref<128x1xf32, #tpu.memory_space<vmem>>) attributes {dimension_semantics = [#tpu.dimension_semantics<arbitrary>], iteration_bounds = array<i64: 1>, scalar_prefetch = 1 : i64, scratch_operands = 2 : i64, tpu.core_type = #tpu.core_type<tc>, window_params = [{transform_indices = @transform_0, window_bounds = array<i64: 1, 1, 128>}, {transform_indices = @transform_1, window_bounds = array<i64: 1, 1, 128>}, {pipeline_mode = #tpu.pipeline_mode<synchronous>, transform_indices = @transform_2, window_bounds = array<i64: 128, 1>}]} {
    %c0_i32 = arith.constant 0 : i32
    %0 = arith.cmpi eq, %arg0, %c0_i32 : i32
    %1 = arith.extui %0 : i1 to i32
    %c0_i32_0 = arith.constant 0 : i32
    %2 = arith.cmpi ne, %1, %c0_i32_0 : i32
    scf.if %2 {
      %cst_19 = arith.constant -3.40282347E+38 : f32
      %36 = vector.broadcast %cst_19 : f32 to vector<128x1xf32>
      %c0_20 = arith.constant 0 : index
      %c0_21 = arith.constant 0 : index
      %37 = vector.load %arg5[%c0_20, %c0_21] : memref<128x1xf32, #tpu.memory_space<vmem>>, vector<128x1xf32>
      tpu.vector_store %arg5[%c0_20, %c0_21], %36 {strides = array<i32>} : memref<128x1xf32, #tpu.memory_space<vmem>>, vector<128x1xf32>,
      %cst_22 = arith.constant 0.000000e+00 : f32
      %38 = vector.broadcast %cst_22 : f32 to vector<128x1xf32>
      %c0_23 = arith.constant 0 : index
      %c0_24 = arith.constant 0 : index
      %39 = vector.load %arg6[%c0_23, %c0_24] : memref<128x1xf32, #tpu.memory_space<vmem>>, vector<128x1xf32>
      tpu.vector_store %arg6[%c0_23, %c0_24], %38 {strides = array<i32>} : memref<128x1xf32, #tpu.memory_space<vmem>>, vector<128x1xf32>,
    } else {
    }
    %c0 = arith.constant 0 : index
    %3 = memref.load %arg1[%c0] : memref<1xf32, #tpu.memory_space<smem>>
    %c0_1 = arith.constant 0 : index
    %c0_2 = arith.constant 0 : index
    %c0_3 = arith.constant 0 : index
    %4 = vector.load %arg2[%c0_1, %c0_2, %c0_3] : memref<1x1x128xi32, #tpu.memory_space<vmem>>, vector<1x1x128xi32>
    %5 = vector.shape_cast %4 : vector<1x1x128xi32> to vector<1x128xi32>
    %c0_4 = arith.constant 0 : index
    %c0_5 = arith.constant 0 : index
    %c0_6 = arith.constant 0 : index
    %6 = vector.load %arg3[%c0_4, %c0_5, %c0_6] : memref<1x1x128xf32, #tpu.memory_space<vmem>>, vector<1x1x128xf32>
    %7 = vector.shape_cast %6 : vector<1x1x128xf32> to vector<1x128xf32>
    %8 = vector.broadcast %3 : f32 to vector<1x128xf32>
    %9 = arith.mulf %7, %8 : vector<1x128xf32>
    %10 = tpu.iota {dimensions = array<i32: 0>} : vector<128x128xi32>
    %11 = vector.broadcast %5 : vector<1x128xi32> to vector<128x128xi32>
    %12 = arith.cmpi eq, %11, %10 : vector<128x128xi32>
    %cst = arith.constant -3.40282347E+38 : f32
    %13 = vector.shape_cast %9 : vector<1x128xf32> to vector<1x128xf32>
    %14 = vector.broadcast %13 : vector<1x128xf32> to vector<128x128xf32>
    %15 = vector.broadcast %cst : f32 to vector<128x128xf32>
    %16 = arith.select %12, %14, %15 : vector<128x128xi1>, vector<128x128xf32>
    %cst_7 = arith.constant dense<0xFF800000> : vector<128xf32>
    %17 = vector.multi_reduction <maximumf>, %16, %cst_7 [1] : vector<128x128xf32> to vector<128xf32>
    %18 = vector.shape_cast %17 : vector<128xf32> to vector<128x1xf32>
    %c0_8 = arith.constant 0 : index
    %c0_9 = arith.constant 0 : index
    %19 = vector.load %arg5[%c0_8, %c0_9] : memref<128x1xf32, #tpu.memory_space<vmem>>, vector<128x1xf32>
    %20 = arith.maximumf %19, %18 : vector<128x1xf32>
    %21 = vector.broadcast %20 : vector<128x1xf32> to vector<128x128xf32>
    %22 = arith.subf %16, %21 : vector<128x128xf32>
    %23 = math.exp %22 : vector<128x128xf32>
    %cst_10 = arith.constant dense<0.000000e+00> : vector<128xf32>
    %24 = vector.multi_reduction <add>, %23, %cst_10 [1] : vector<128x128xf32> to vector<128xf32>
    %25 = vector.shape_cast %24 : vector<128xf32> to vector<128x1xf32>
    %c0_11 = arith.constant 0 : index
    %c0_12 = arith.constant 0 : index
    %26 = vector.load %arg6[%c0_11, %c0_12] : memref<128x1xf32, #tpu.memory_space<vmem>>, vector<128x1xf32>
    %27 = arith.subf %19, %20 : vector<128x1xf32>
    %28 = math.exp %27 : vector<128x1xf32>
    %29 = arith.mulf %26, %28 : vector<128x1xf32>
    %30 = arith.addf %29, %25 : vector<128x1xf32>
    %c0_13 = arith.constant 0 : index
    %c0_14 = arith.constant 0 : index
    %31 = vector.load %arg6[%c0_13, %c0_14] : memref<128x1xf32, #tpu.memory_space<vmem>>, vector<128x1xf32>
    tpu.vector_store %arg6[%c0_13, %c0_14], %30 {strides = array<i32>} : memref<128x1xf32, #tpu.memory_space<vmem>>, vector<128x1xf32>,
    %c0_15 = arith.constant 0 : index
    %c0_16 = arith.constant 0 : index
    %32 = vector.load %arg5[%c0_15, %c0_16] : memref<128x1xf32, #tpu.memory_space<vmem>>, vector<128x1xf32>
    tpu.vector_store %arg5[%c0_15, %c0_16], %20 {strides = array<i32>} : memref<128x1xf32, #tpu.memory_space<vmem>>, vector<128x1xf32>,
    %c0_i32_17 = arith.constant 0 : i32
    %33 = arith.cmpi eq, %arg0, %c0_i32_17 : i32
    %34 = arith.extui %33 : i1 to i32
    %c0_i32_18 = arith.constant 0 : i32
    %35 = arith.cmpi ne, %34, %c0_i32_18 : i32
    scf.if %35 {
      %c0_19 = arith.constant 0 : index
      %c0_20 = arith.constant 0 : index
      %36 = vector.load %arg5[%c0_19, %c0_20] : memref<128x1xf32, #tpu.memory_space<vmem>>, vector<128x1xf32>
      %c0_21 = arith.constant 0 : index
      %c0_22 = arith.constant 0 : index
      %37 = vector.load %arg6[%c0_21, %c0_22] : memref<128x1xf32, #tpu.memory_space<vmem>>, vector<128x1xf32>
      %38 = math.log %37 : vector<128x1xf32>
      %39 = arith.addf %36, %38 : vector<128x1xf32>
      %c0_23 = arith.constant 0 : index
      %c0_24 = arith.constant 0 : index
      %40 = vector.load %arg4[%c0_23, %c0_24] : memref<128x1xf32, #tpu.memory_space<vmem>>, vector<128x1xf32>
      tpu.vector_store %arg4[%c0_23, %c0_24], %39 {strides = array<i32>} : memref<128x1xf32, #tpu.memory_space<vmem>>, vector<128x1xf32>,
    } else {
    }
    return
  }
  func.func @transform_0(%arg0: i32, %arg1: memref<1xf32, #tpu.memory_space<smem>>) -> (i32, i32, i32) {
    %c0_i32 = arith.constant 0 : i32
    %c0_i32_0 = arith.constant 0 : i32
    %c0_i32_1 = arith.constant 0 : i32
    return %arg0, %c0_i32, %c0_i32_0 : i32, i32, i32
  }
  func.func @transform_1(%arg0: i32, %arg1: memref<1xf32, #tpu.memory_space<smem>>) -> (i32, i32, i32) {
    %c0_i32 = arith.constant 0 : i32
    %c0_i32_0 = arith.constant 0 : i32
    %c0_i32_1 = arith.constant 0 : i32
    return %arg0, %c0_i32, %c0_i32_0 : i32, i32, i32
  }
  func.func @transform_2(%arg0: i32, %arg1: memref<1xf32, #tpu.memory_space<smem>>) -> (i32, i32) {
    %c0_i32 = arith.constant 0 : i32
    %c0_i32_0 = arith.constant 0 : i32
    %c0_i32_1 = arith.constant 0 : i32
    return %c0_i32, %c0_i32_0 : i32, i32
  }
}

</mosaic_0001>

<llo_original>
// kernel: tpu_custom_call.1
$region0: #{tpu_custom_call.1}
  #allocation0 [shape = 'u32[]', space=smem, size = 0x4, offset = 0x4, fixed_abs, tag = 'smem constant byte address 0x4 - core index']
  #allocation1 [shape = 'u32[144,128]{1,0:T(1,128)}', space=vmem, size = 0x12000, scoped, tag = 'internal scratch']
  #allocation2 [shape = 'f32[128,1]{1,0:T(8,128)}', space=vmem, size = 0x10000, scoped, tag = 'scratch operand']
  #allocation3 [shape = 'f32[128,1]{1,0:T(8,128)}', space=vmem, size = 0x10000, scoped, tag = 'scratch operand']
  #allocation4 [shape = 's32[1]{0}', space=sflag, size = 0x4, scoped, tag = 'scoped memory for tpu_custom_call.1']
  #allocation5 [shape = 'f32[1]{0:T(128)S(6)}', space=smem, size = 0x200, scoped, tag = 'prefetched SMEM operand 0']
  %s0 = inlined_call_operand.<no memory space> [shape: f32[1], index: 0, kind: input, shape index: {}]
  %s1 = inlined_call_operand.vmem [shape: s32[1,1,128], index: 1, kind: input, shape index: {}]
  %s2 = inlined_call_operand.vmem [shape: f32[1,1,128], index: 2, kind: input, shape index: {}]
  %s3 = inlined_call_operand.vmem [shape: f32[128,1], index: 3, kind: output, shape index: {}]
  %s4 = sld [smem:[#allocation0]]
  $region26: #{tpu_custom_call.1} parent=0
    _
  %s6 = ssub.s32 1, %s4
  %s7 = scalar_select 0, %s6, %s4
  %8 = sst [smem:[#allocation5]] %s0
  // Predicated region
  $region2: #{tpu_custom_call.1} parent=0 // pred_check
    _
  $region3: #{tpu_custom_call.1} parent=0 // pred_check_branch
    %10 = sbr.rel (0) target = $region5
  $region4: #{tpu_custom_call.1} parent=0 // pred_region
    _
  $region5: #{tpu_custom_call.1} parent=0 // pred_fallthru
    _
  // Predicated region
  $region6: #{tpu_custom_call.1} parent=0 // pred_check
    _
  $region7: #{tpu_custom_call.1} parent=0 // pred_check_branch
    %12 = sbr.rel (0) target = $region9
  $region8: #{tpu_custom_call.1} parent=0 // pred_region
    _
  $region9: #{tpu_custom_call.1} parent=0 // pred_fallthru
    _
  %p13 = scmp.eq.s32.totalorder 0, 0
  // Predicated region
  $region10: #{tpu_custom_call.1} parent=0 // pred_check
    %p14 = pneg %p13
  $region11: #{tpu_custom_call.1} parent=0 // pred_check_branch
    %16 = sbr.rel (%p14) target = $region13
  $region12: #{tpu_custom_call.1} parent=0 // pred_region
    %vm17 = vcmask 7168
    %18 = vst.msk [vmem:[#allocation2] sm:$0xff] %vm17, -3.4028235e+38
    %19 = vst.msk [vmem:[#allocation2 + $0x8] sm:$0xff] %vm17, -3.4028235e+38
    %20 = vst.msk [vmem:[#allocation2 + $0x10] sm:$0xff] %vm17, -3.4028235e+38
    %21 = vst.msk [vmem:[#allocation2 + $0x18] sm:$0xff] %vm17, -3.4028235e+38
    %22 = vst.msk [vmem:[#allocation2 + $0x20] sm:$0xff] %vm17, -3.4028235e+38
    %23 = vst.msk [vmem:[#allocation2 + $0x28] sm:$0xff] %vm17, -3.4028235e+38
    %24 = vst.msk [vmem:[#allocation2 + $0x30] sm:$0xff] %vm17, -3.4028235e+38
    %25 = vst.msk [vmem:[#allocation2 + $0x38] sm:$0xff] %vm17, -3.4028235e+38
    %26 = vst.msk [vmem:[#allocation2 + $0x40] sm:$0xff] %vm17, -3.4028235e+38
    %27 = vst.msk [vmem:[#allocation2 + $0x48] sm:$0xff] %vm17, -3.4028235e+38
    %28 = vst.msk [vmem:[#allocation2 + $0x50] sm:$0xff] %vm17, -3.4028235e+38
    %29 = vst.msk [vmem:[#allocation2 + $0x58] sm:$0xff] %vm17, -3.4028235e+38
    %30 = vst.msk [vmem:[#allocation2 + $0x60] sm:$0xff] %vm17, -3.4028235e+38
    %31 = vst.msk [vmem:[#allocation2 + $0x68] sm:$0xff] %vm17, -3.4028235e+38
    %32 = vst.msk [vmem:[#allocation2 + $0x70] sm:$0xff] %vm17, -3.4028235e+38
    %33 = vst.msk [vmem:[#allocation2 + $0x78] sm:$0xff] %vm17, -3.4028235e+38
    %34 = vst.msk [vmem:[#allocation3] sm:$0xff] %vm17, 0.0
    %35 = vst.msk [vmem:[#allocation3 + $0x8] sm:$0xff] %vm17, 0.0
    %36 = vst.msk [vmem:[#allocation3 + $0x10] sm:$0xff] %vm17, 0.0
    %37 = vst.msk [vmem:[#allocation3 + $0x18] sm:$0xff] %vm17, 0.0
    %38 = vst.msk [vmem:[#allocation3 + $0x20] sm:$0xff] %vm17, 0.0
    %39 = vst.msk [vmem:[#allocation3 + $0x28] sm:$0xff] %vm17, 0.0
    %40 = vst.msk [vmem:[#allocation3 + $0x30] sm:$0xff] %vm17, 0.0
    %41 = vst.msk [vmem:[#allocation3 + $0x38] sm:$0xff] %vm17, 0.0
    %42 = vst.msk [vmem:[#allocation3 + $0x40] sm:$0xff] %vm17, 0.0
    %43 = vst.msk [vmem:[#allocation3 + $0x48] sm:$0xff] %vm17, 0.0
    %44 = vst.msk [vmem:[#allocation3 + $0x50] sm:$0xff] %vm17, 0.0
    %45 = vst.msk [vmem:[#allocation3 + $0x58] sm:$0xff] %vm17, 0.0
    %46 = vst.msk [vmem:[#allocation3 + $0x60] sm:$0xff] %vm17, 0.0
    %47 = vst.msk [vmem:[#allocation3 + $0x68] sm:$0xff] %vm17, 0.0
    %48 = vst.msk [vmem:[#allocation3 + $0x70] sm:$0xff] %vm17, 0.0
    %49 = vst.msk [vmem:[#allocation3 + $0x78] sm:$0xff] %vm17, 0.0
  $region13: #{tpu_custom_call.1} parent=0 // pred_fallthru
    _
  %s50 = sld [smem:[#allocation5]]
  %v51 = vld [vmem:[%s1] sm:$0x1]
  %v52 = vld [vmem:[%s2] sm:$0x1]
  %v53 = vstv %s50
  %v54 = vmul.f32 %v52, %v53
  %v55 = vlaneseq
  %v56 = vshrl.u32 %v55, 7
  %v57 = vadd.s32 %v56, 8
  %v58 = vadd.s32 %v56, 16
  %v59 = vadd.s32 %v56, 24
  %v60 = vadd.s32 %v56, 32
  %v61 = vadd.s32 %v56, 40
  %v62 = vadd.s32 %v56, 48
  %v63 = vadd.s32 %v56, 56
  %v64 = vadd.s32 %v56, 64
  %v65 = vadd.s32 %v56, 72
  %v66 = vadd.s32 %v56, 80
  %v67 = vadd.s32 %v56, 88
  %v68 = vadd.s32 %v56, 96
  %v69 = vadd.s32 %v56, 104
  %v70 = vadd.s32 %v56, 112
  %v71 = vadd.s32 %v56, 120
  %v72 = vlaneseq
  %v73 = vshrl.u32 %v72, 7
  %v74 = vsub.s32 0, %v73
  %v75 = vrot.slane %v51, %v74
  %vm76 = vcmp.eq.s32.totalorder %v75, %v56
  %vm77 = vcmp.eq.s32.totalorder %v75, %v57
  %vm78 = vcmp.eq.s32.totalorder %v75, %v58
  %vm79 = vcmp.eq.s32.totalorder %v75, %v59
  %vm80 = vcmp.eq.s32.totalorder %v75, %v60
  %vm81 = vcmp.eq.s32.totalorder %v75, %v61
  %vm82 = vcmp.eq.s32.totalorder %v75, %v62
  %vm83 = vcmp.eq.s32.totalorder %v75, %v63
  %vm84 = vcmp.eq.s32.totalorder %v75, %v64
  %vm85 = vcmp.eq.s32.totalorder %v75, %v65
  %vm86 = vcmp.eq.s32.totalorder %v75, %v66
  %vm87 = vcmp.eq.s32.totalorder %v75, %v67
  %vm88 = vcmp.eq.s32.totalorder %v75, %v68
  %vm89 = vcmp.eq.s32.totalorder %v75, %v69
  %vm90 = vcmp.eq.s32.totalorder %v75, %v70
  %vm91 = vcmp.eq.s32.totalorder %v75, %v71
  %v93 = vlaneseq
  %v94 = vshrl.u32 %v93, 7
  %v95 = vsub.s32 0, %v94
  %v96 = vrot.slane %v54, %v95
  %v98 = vsel %vm76, %v96, -3.4028235e+38
  %v99 = vsel %vm77, %v96, -3.4028235e+38
  %v100 = vsel %vm78, %v96, -3.4028235e+38
  %v101 = vsel %vm79, %v96, -3.4028235e+38
  %v102 = vsel %vm80, %v96, -3.4028235e+38
  %v103 = vsel %vm81, %v96, -3.4028235e+38
  %v104 = vsel %vm82, %v96, -3.4028235e+38
  %v105 = vsel %vm83, %v96, -3.4028235e+38
  %v106 = vsel %vm84, %v96, -3.4028235e+38
  %v107 = vsel %vm85, %v96, -3.4028235e+38
  %v108 = vsel %vm86, %v96, -3.4028235e+38
  %v109 = vsel %vm87, %v96, -3.4028235e+38
  %v110 = vsel %vm88, %v96, -3.4028235e+38
  %v111 = vsel %vm89, %v96, -3.4028235e+38
  %v112 = vsel %vm90, %v96, -3.4028235e+38
  %v113 = vsel %vm91, %v96, -3.4028235e+38
  %114 = vmax.xlane.f32.xlu0 %v98
  %v115 = vpop.xlane.xlu0 %114
  %116 = vmax.xlane.f32.xlu0 %v99
  %v117 = vpop.xlane.xlu0 %116
  %118 = vmax.xlane.f32.xlu0 %v100
  %v119 = vpop.xlane.xlu0 %118
  %120 = vmax.xlane.f32.xlu0 %v101
  %v121 = vpop.xlane.xlu0 %120
  %122 = vmax.xlane.f32.xlu0 %v102
  %v123 = vpop.xlane.xlu0 %122
  %124 = vmax.xlane.f32.xlu0 %v103
  %v125 = vpop.xlane.xlu0 %124
  %126 = vmax.xlane.f32.xlu0 %v104
  %v127 = vpop.xlane.xlu0 %126
  %128 = vmax.xlane.f32.xlu0 %v105
  %v129 = vpop.xlane.xlu0 %128
  %130 = vmax.xlane.f32.xlu0 %v106
  %v131 = vpop.xlane.xlu0 %130
  %132 = vmax.xlane.f32.xlu0 %v107
  %v133 = vpop.xlane.xlu0 %132
  %134 = vmax.xlane.f32.xlu0 %v108
  %v135 = vpop.xlane.xlu0 %134
  %136 = vmax.xlane.f32.xlu0 %v109
  %v137 = vpop.xlane.xlu0 %136
  %138 = vmax.xlane.f32.xlu0 %v110
  %v139 = vpop.xlane.xlu0 %138
  %140 = vmax.xlane.f32.xlu0 %v111
  %v141 = vpop.xlane.xlu0 %140
  %142 = vmax.xlane.f32.xlu0 %v112
  %v143 = vpop.xlane.xlu0 %142
  %144 = vmax.xlane.f32.xlu0 %v113
  %v145 = vpop.xlane.xlu0 %144
  %v146 = vld [vmem:[#allocation2] sm:$0xff]
  %v147 = vld [vmem:[#allocation2 + $0x8] sm:$0xff]
  %v148 = vld [vmem:[#allocation2 + $0x10] sm:$0xff]
  %v149 = vld [vmem:[#allocation2 + $0x18] sm:$0xff]
  %v150 = vld [vmem:[#allocation2 + $0x20] sm:$0xff]
  %v151 = vld [vmem:[#allocation2 + $0x28] sm:$0xff]
  %v152 = vld [vmem:[#allocation2 + $0x30] sm:$0xff]
  %v153 = vld [vmem:[#allocation2 + $0x38] sm:$0xff]
  %v154 = vld [vmem:[#allocation2 + $0x40] sm:$0xff]
  %v155 = vld [vmem:[#allocation2 + $0x48] sm:$0xff]
  %v156 = vld [vmem:[#allocation2 + $0x50] sm:$0xff]
  %v157 = vld [vmem:[#allocation2 + $0x58] sm:$0xff]
  %v158 = vld [vmem:[#allocation2 + $0x60] sm:$0xff]
  %v159 = vld [vmem:[#allocation2 + $0x68] sm:$0xff]
  %v160 = vld [vmem:[#allocation2 + $0x70] sm:$0xff]
  %v161 = vld [vmem:[#allocation2 + $0x78] sm:$0xff]
  %v162 = vmax.f32 %v146, %v115
  %v163 = vmax.f32 %v147, %v117
  %v164 = vmax.f32 %v148, %v119
  %v165 = vmax.f32 %v149, %v121
  %v166 = vmax.f32 %v150, %v123
  %v167 = vmax.f32 %v151, %v125
  %v168 = vmax.f32 %v152, %v127
  %v169 = vmax.f32 %v153, %v129
  %v170 = vmax.f32 %v154, %v131
  %v171 = vmax.f32 %v155, %v133
  %v172 = vmax.f32 %v156, %v135
  %v173 = vmax.f32 %v157, %v137
  %v174 = vmax.f32 %v158, %v139
  %v175 = vmax.f32 %v159, %v141
  %v176 = vmax.f32 %v160, %v143
  %v177 = vmax.f32 %v161, %v145
  %179 = vset.pattern.permute.xlu0 0
  %180 = vperm.xlu0 %179, %v162
  %v181 = vpop.permute.xlu0 %180
  %184 = vset.pattern.permute.xlu0 0
  %185 = vperm.xlu0 %184, %v163
  %v186 = vpop.permute.xlu0 %185
  %189 = vset.pattern.permute.xlu0 0
  %190 = vperm.xlu0 %189, %v164
  %v191 = vpop.permute.xlu0 %190
  %194 = vset.pattern.permute.xlu0 0
  %195 = vperm.xlu0 %194, %v165
  %v196 = vpop.permute.xlu0 %195
  %199 = vset.pattern.permute.xlu0 0
  %200 = vperm.xlu0 %199, %v166
  %v201 = vpop.permute.xlu0 %200
  %204 = vset.pattern.permute.xlu0 0
  %205 = vperm.xlu0 %204, %v167
  %v206 = vpop.permute.xlu0 %205
  %209 = vset.pattern.permute.xlu0 0
  %210 = vperm.xlu0 %209, %v168
  %v211 = vpop.permute.xlu0 %210
  %214 = vset.pattern.permute.xlu0 0
  %215 = vperm.xlu0 %214, %v169
  %v216 = vpop.permute.xlu0 %215
  %219 = vset.pattern.permute.xlu0 0
  %220 = vperm.xlu0 %219, %v170
  %v221 = vpop.permute.xlu0 %220
  %224 = vset.pattern.permute.xlu0 0
  %225 = vperm.xlu0 %224, %v171
  %v226 = vpop.permute.xlu0 %225
  %229 = vset.pattern.permute.xlu0 0
  %230 = vperm.xlu0 %229, %v172
  %v231 = vpop.permute.xlu0 %230
  %234 = vset.pattern.permute.xlu0 0
  %235 = vperm.xlu0 %234, %v173
  %v236 = vpop.permute.xlu0 %235
  %239 = vset.pattern.permute.xlu0 0
  %240 = vperm.xlu0 %239, %v174
  %v241 = vpop.permute.xlu0 %240
  %244 = vset.pattern.permute.xlu0 0
  %245 = vperm.xlu0 %244, %v175
  %v246 = vpop.permute.xlu0 %245
  %249 = vset.pattern.permute.xlu0 0
  %250 = vperm.xlu0 %249, %v176
  %v251 = vpop.permute.xlu0 %250
  %254 = vset.pattern.permute.xlu0 0
  %255 = vperm.xlu0 %254, %v177
  %v256 = vpop.permute.xlu0 %255
  %v258 = vsub.f32 %v98, %v181
  %v259 = vsub.f32 %v99, %v186
  %v260 = vsub.f32 %v100, %v191
  %v261 = vsub.f32 %v101, %v196
  %v262 = vsub.f32 %v102, %v201
  %v263 = vsub.f32 %v103, %v206
  %v264 = vsub.f32 %v104, %v211
  %v265 = vsub.f32 %v105, %v216
  %v266 = vsub.f32 %v106, %v221
  %v267 = vsub.f32 %v107, %v226
  %v268 = vsub.f32 %v108, %v231
  %v269 = vsub.f32 %v109, %v236
  %v270 = vsub.f32 %v110, %v241
  %v271 = vsub.f32 %v111, %v246
  %v272 = vsub.f32 %v112, %v251
  %v273 = vsub.f32 %v113, %v256
  %v274 = vmul.f32 %v258, 1.442695
  %v275 = vpow.pop %v274
  %v276 = vmul.f32 %v259, 1.442695
  %v277 = vpow.pop %v276
  %v278 = vmul.f32 %v260, 1.442695
  %v279 = vpow.pop %v278
  %v280 = vmul.f32 %v261, 1.442695
  %v281 = vpow.pop %v280
  %v282 = vmul.f32 %v262, 1.442695
  %v283 = vpow.pop %v282
  %v284 = vmul.f32 %v263, 1.442695
  %v285 = vpow.pop %v284
  %v286 = vmul.f32 %v264, 1.442695
  %v287 = vpow.pop %v286
  %v288 = vmul.f32 %v265, 1.442695
  %v289 = vpow.pop %v288
  %v290 = vmul.f32 %v266, 1.442695
  %v291 = vpow.pop %v290
  %v292 = vmul.f32 %v267, 1.442695
  %v293 = vpow.pop %v292
  %v294 = vmul.f32 %v268, 1.442695
  %v295 = vpow.pop %v294
  %v296 = vmul.f32 %v269, 1.442695
  %v297 = vpow.pop %v296
  %v298 = vmul.f32 %v270, 1.442695
  %v299 = vpow.pop %v298
  %v300 = vmul.f32 %v271, 1.442695
  %v301 = vpow.pop %v300
  %v302 = vmul.f32 %v272, 1.442695
  %v303 = vpow.pop %v302
  %v304 = vmul.f32 %v273, 1.442695
  %v305 = vpow.pop %v304
  %306 = vadd.xlane.f32.xlu0 %v275
  %v307 = vpop.xlane.xlu0 %306
  %308 = vadd.xlane.f32.xlu0 %v277
  %v309 = vpop.xlane.xlu0 %308
  %310 = vadd.xlane.f32.xlu0 %v279
  %v311 = vpop.xlane.xlu0 %310
  %312 = vadd.xlane.f32.xlu0 %v281
  %v313 = vpop.xlane.xlu0 %312
  %314 = vadd.xlane.f32.xlu0 %v283
  %v315 = vpop.xlane.xlu0 %314
  %316 = vadd.xlane.f32.xlu0 %v285
  %v317 = vpop.xlane.xlu0 %316
  %318 = vadd.xlane.f32.xlu0 %v287
  %v319 = vpop.xlane.xlu0 %318
  %320 = vadd.xlane.f32.xlu0 %v289
  %v321 = vpop.xlane.xlu0 %320
  %322 = vadd.xlane.f32.xlu0 %v291
  %v323 = vpop.xlane.xlu0 %322
  %324 = vadd.xlane.f32.xlu0 %v293
  %v325 = vpop.xlane.xlu0 %324
  %326 = vadd.xlane.f32.xlu0 %v295
  %v327 = vpop.xlane.xlu0 %326
  %328 = vadd.xlane.f32.xlu0 %v297
  %v329 = vpop.xlane.xlu0 %328
  %330 = vadd.xlane.f32.xlu0 %v299
  %v331 = vpop.xlane.xlu0 %330
  %332 = vadd.xlane.f32.xlu0 %v301
  %v333 = vpop.xlane.xlu0 %332
  %334 = vadd.xlane.f32.xlu0 %v303
  %v335 = vpop.xlane.xlu0 %334
  %336 = vadd.xlane.f32.xlu0 %v305
  %v337 = vpop.xlane.xlu0 %336
  %v338 = vld [vmem:[#allocation3] sm:$0xff]
  %v339 = vld [vmem:[#allocation3 + $0x8] sm:$0xff]
  %v340 = vld [vmem:[#allocation3 + $0x10] sm:$0xff]
  %v341 = vld [vmem:[#allocation3 + $0x18] sm:$0xff]
  %v342 = vld [vmem:[#allocation3 + $0x20] sm:$0xff]
  %v343 = vld [vmem:[#allocation3 + $0x28] sm:$0xff]
  %v344 = vld [vmem:[#allocation3 + $0x30] sm:$0xff]
  %v345 = vld [vmem:[#allocation3 + $0x38] sm:$0xff]
  %v346 = vld [vmem:[#allocation3 + $0x40] sm:$0xff]
  %v347 = vld [vmem:[#allocation3 + $0x48] sm:$0xff]
  %v348 = vld [vmem:[#allocation3 + $0x50] sm:$0xff]
  %v349 = vld [vmem:[#allocation3 + $0x58] sm:$0xff]
  %v350 = vld [vmem:[#allocation3 + $0x60] sm:$0xff]
  %v351 = vld [vmem:[#allocation3 + $0x68] sm:$0xff]
  %v352 = vld [vmem:[#allocation3 + $0x70] sm:$0xff]
  %v353 = vld [vmem:[#allocation3 + $0x78] sm:$0xff]
  %v354 = vsub.f32 %v146, %v162
  %v355 = vsub.f32 %v147, %v163
  %v356 = vsub.f32 %v148, %v164
  %v357 = vsub.f32 %v149, %v165
  %v358 = vsub.f32 %v150, %v166
  %v359 = vsub.f32 %v151, %v167
  %v360 = vsub.f32 %v152, %v168
  %v361 = vsub.f32 %v153, %v169
  %v362 = vsub.f32 %v154, %v170
  %v363 = vsub.f32 %v155, %v171
  %v364 = vsub.f32 %v156, %v172
  %v365 = vsub.f32 %v157, %v173
  %v366 = vsub.f32 %v158, %v174
  %v367 = vsub.f32 %v159, %v175
  %v368 = vsub.f32 %v160, %v176
  %v369 = vsub.f32 %v161, %v177
  %v370 = vmul.f32 %v354, 1.442695
  %v371 = vpow.pop %v370
  %v372 = vmul.f32 %v355, 1.442695
  %v373 = vpow.pop %v372
  %v374 = vmul.f32 %v356, 1.442695
  %v375 = vpow.pop %v374
  %v376 = vmul.f32 %v357, 1.442695
  %v377 = vpow.pop %v376
  %v378 = vmul.f32 %v358, 1.442695
  %v379 = vpow.pop %v378
  %v380 = vmul.f32 %v359, 1.442695
  %v381 = vpow.pop %v380
  %v382 = vmul.f32 %v360, 1.442695
  %v383 = vpow.pop %v382
  %v384 = vmul.f32 %v361, 1.442695
  %v385 = vpow.pop %v384
  %v386 = vmul.f32 %v362, 1.442695
  %v387 = vpow.pop %v386
  %v388 = vmul.f32 %v363, 1.442695
  %v389 = vpow.pop %v388
  %v390 = vmul.f32 %v364, 1.442695
  %v391 = vpow.pop %v390
  %v392 = vmul.f32 %v365, 1.442695
  %v393 = vpow.pop %v392
  %v394 = vmul.f32 %v366, 1.442695
  %v395 = vpow.pop %v394
  %v396 = vmul.f32 %v367, 1.442695
  %v397 = vpow.pop %v396
  %v398 = vmul.f32 %v368, 1.442695
  %v399 = vpow.pop %v398
  %v400 = vmul.f32 %v369, 1.442695
  %v401 = vpow.pop %v400
  %v402 = vmul.f32 %v338, %v371
  %v403 = vmul.f32 %v339, %v373
  %v404 = vmul.f32 %v340, %v375
  %v405 = vmul.f32 %v341, %v377
  %v406 = vmul.f32 %v342, %v379
  %v407 = vmul.f32 %v343, %v381
  %v408 = vmul.f32 %v344, %v383
  %v409 = vmul.f32 %v345, %v385
  %v410 = vmul.f32 %v346, %v387
  %v411 = vmul.f32 %v347, %v389
  %v412 = vmul.f32 %v348, %v391
  %v413 = vmul.f32 %v349, %v393
  %v414 = vmul.f32 %v350, %v395
  %v415 = vmul.f32 %v351, %v397
  %v416 = vmul.f32 %v352, %v399
  %v417 = vmul.f32 %v353, %v401
  %v418 = vadd.f32 %v402, %v307
  %v419 = vadd.f32 %v403, %v309
  %v420 = vadd.f32 %v404, %v311
  %v421 = vadd.f32 %v405, %v313
  %v422 = vadd.f32 %v406, %v315
  %v423 = vadd.f32 %v407, %v317
  %v424 = vadd.f32 %v408, %v319
  %v425 = vadd.f32 %v409, %v321
  %v426 = vadd.f32 %v410, %v323
  %v427 = vadd.f32 %v411, %v325
  %v428 = vadd.f32 %v412, %v327
  %v429 = vadd.f32 %v413, %v329
  %v430 = vadd.f32 %v414, %v331
  %v431 = vadd.f32 %v415, %v333
  %v432 = vadd.f32 %v416, %v335
  %v433 = vadd.f32 %v417, %v337
  %vm434 = vcmask 7168
  %435 = vst.msk [vmem:[#allocation3] sm:$0xff] %vm434, %v418
  %436 = vst.msk [vmem:[#allocation3 + $0x8] sm:$0xff] %vm434, %v419
  %437 = vst.msk [vmem:[#allocation3 + $0x10] sm:$0xff] %vm434, %v420
  %438 = vst.msk [vmem:[#allocation3 + $0x18] sm:$0xff] %vm434, %v421
  %439 = vst.msk [vmem:[#allocation3 + $0x20] sm:$0xff] %vm434, %v422
  %440 = vst.msk [vmem:[#allocation3 + $0x28] sm:$0xff] %vm434, %v423
  %441 = vst.msk [vmem:[#allocation3 + $0x30] sm:$0xff] %vm434, %v424
  %442 = vst.msk [vmem:[#allocation3 + $0x38] sm:$0xff] %vm434, %v425
  %443 = vst.msk [vmem:[#allocation3 + $0x40] sm:$0xff] %vm434, %v426
  %444 = vst.msk [vmem:[#allocation3 + $0x48] sm:$0xff] %vm434, %v427
  %445 = vst.msk [vmem:[#allocation3 + $0x50] sm:$0xff] %vm434, %v428
  %446 = vst.msk [vmem:[#allocation3 + $0x58] sm:$0xff] %vm434, %v429
  %447 = vst.msk [vmem:[#allocation3 + $0x60] sm:$0xff] %vm434, %v430
  %448 = vst.msk [vmem:[#allocation3 + $0x68] sm:$0xff] %vm434, %v431
  %449 = vst.msk [vmem:[#allocation3 + $0x70] sm:$0xff] %vm434, %v432
  %450 = vst.msk [vmem:[#allocation3 + $0x78] sm:$0xff] %vm434, %v433
  %451 = vst.msk [vmem:[#allocation2] sm:$0xff] %vm434, %v162
  %452 = vst.msk [vmem:[#allocation2 + $0x8] sm:$0xff] %vm434, %v163
  %453 = vst.msk [vmem:[#allocation2 + $0x10] sm:$0xff] %vm434, %v164
  %454 = vst.msk [vmem:[#allocation2 + $0x18] sm:$0xff] %vm434, %v165
  %455 = vst.msk [vmem:[#allocation2 + $0x20] sm:$0xff] %vm434, %v166
  %456 = vst.msk [vmem:[#allocation2 + $0x28] sm:$0xff] %vm434, %v167
  %457 = vst.msk [vmem:[#allocation2 + $0x30] sm:$0xff] %vm434, %v168
  %458 = vst.msk [vmem:[#allocation2 + $0x38] sm:$0xff] %vm434, %v169
  %459 = vst.msk [vmem:[#allocation2 + $0x40] sm:$0xff] %vm434, %v170
  %460 = vst.msk [vmem:[#allocation2 + $0x48] sm:$0xff] %vm434, %v171
  %461 = vst.msk [vmem:[#allocation2 + $0x50] sm:$0xff] %vm434, %v172
  %462 = vst.msk [vmem:[#allocation2 + $0x58] sm:$0xff] %vm434, %v173
  %463 = vst.msk [vmem:[#allocation2 + $0x60] sm:$0xff] %vm434, %v174
  %464 = vst.msk [vmem:[#allocation2 + $0x68] sm:$0xff] %vm434, %v175
  %465 = vst.msk [vmem:[#allocation2 + $0x70] sm:$0xff] %vm434, %v176
  %466 = vst.msk [vmem:[#allocation2 + $0x78] sm:$0xff] %vm434, %v177
  // Predicated region
  $region14: #{tpu_custom_call.1} parent=0 // pred_check
    %p467 = pneg %p13
  $region15: #{tpu_custom_call.1} parent=0 // pred_check_branch
    %469 = sbr.rel (%p467) target = $region17
  $region16: #{tpu_custom_call.1} parent=0 // pred_region
    %v470 = vld [vmem:[#allocation2] sm:$0xff]
    %v471 = vld [vmem:[#allocation2 + $0x8] sm:$0xff]
    %v472 = vld [vmem:[#allocation2 + $0x10] sm:$0xff]
    %v473 = vld [vmem:[#allocation2 + $0x18] sm:$0xff]
    %v474 = vld [vmem:[#allocation2 + $0x20] sm:$0xff]
    %v475 = vld [vmem:[#allocation2 + $0x28] sm:$0xff]
    %v476 = vld [vmem:[#allocation2 + $0x30] sm:$0xff]
    %v477 = vld [vmem:[#allocation2 + $0x38] sm:$0xff]
    %v478 = vld [vmem:[#allocation2 + $0x40] sm:$0xff]
    %v479 = vld [vmem:[#allocation2 + $0x48] sm:$0xff]
    %v480 = vld [vmem:[#allocation2 + $0x50] sm:$0xff]
    %v481 = vld [vmem:[#allocation2 + $0x58] sm:$0xff]
    %v482 = vld [vmem:[#allocation2 + $0x60] sm:$0xff]
    %v483 = vld [vmem:[#allocation2 + $0x68] sm:$0xff]
    %v484 = vld [vmem:[#allocation2 + $0x70] sm:$0xff]
    %v485 = vld [vmem:[#allocation2 + $0x78] sm:$0xff]
    %v486 = vld [vmem:[#allocation3] sm:$0xff]
    %v487 = vld [vmem:[#allocation3 + $0x8] sm:$0xff]
    %v488 = vld [vmem:[#allocation3 + $0x10] sm:$0xff]
    %v489 = vld [vmem:[#allocation3 + $0x18] sm:$0xff]
    %v490 = vld [vmem:[#allocation3 + $0x20] sm:$0xff]
    %v491 = vld [vmem:[#allocation3 + $0x28] sm:$0xff]
    %v492 = vld [vmem:[#allocation3 + $0x30] sm:$0xff]
    %v493 = vld [vmem:[#allocation3 + $0x38] sm:$0xff]
    %v494 = vld [vmem:[#allocation3 + $0x40] sm:$0xff]
    %v495 = vld [vmem:[#allocation3 + $0x48] sm:$0xff]
    %v496 = vld [vmem:[#allocation3 + $0x50] sm:$0xff]
    %v497 = vld [vmem:[#allocation3 + $0x58] sm:$0xff]
    %v498 = vld [vmem:[#allocation3 + $0x60] sm:$0xff]
    %v499 = vld [vmem:[#allocation3 + $0x68] sm:$0xff]
    %v500 = vld [vmem:[#allocation3 + $0x70] sm:$0xff]
    %v501 = vld [vmem:[#allocation3 + $0x78] sm:$0xff]
    %v502 = vlog2.pop %v486
    %v503 = vmul.f32 %v502, 0.6931472
    %v504 = vlog2.pop %v487
    %v505 = vmul.f32 %v504, 0.6931472
    %v506 = vlog2.pop %v488
    %v507 = vmul.f32 %v506, 0.6931472
    %v508 = vlog2.pop %v489
    %v509 = vmul.f32 %v508, 0.6931472
    %v510 = vlog2.pop %v490
    %v511 = vmul.f32 %v510, 0.6931472
    %v512 = vlog2.pop %v491
    %v513 = vmul.f32 %v512, 0.6931472
    %v514 = vlog2.pop %v492
    %v515 = vmul.f32 %v514, 0.6931472
    %v516 = vlog2.pop %v493
    %v517 = vmul.f32 %v516, 0.6931472
    %v518 = vlog2.pop %v494
    %v519 = vmul.f32 %v518, 0.6931472
    %v520 = vlog2.pop %v495
    %v521 = vmul.f32 %v520, 0.6931472
    %v522 = vlog2.pop %v496
    %v523 = vmul.f32 %v522, 0.6931472
    %v524 = vlog2.pop %v497
    %v525 = vmul.f32 %v524, 0.6931472
    %v526 = vlog2.pop %v498
    %v527 = vmul.f32 %v526, 0.6931472
    %v528 = vlog2.pop %v499
    %v529 = vmul.f32 %v528, 0.6931472
    %v530 = vlog2.pop %v500
    %v531 = vmul.f32 %v530, 0.6931472
    %v532 = vlog2.pop %v501
    %v533 = vmul.f32 %v532, 0.6931472
    %v534 = vadd.f32 %v470, %v503
    %v535 = vadd.f32 %v471, %v505
    %v536 = vadd.f32 %v472, %v507
    %v537 = vadd.f32 %v473, %v509
    %v538 = vadd.f32 %v474, %v511
    %v539 = vadd.f32 %v475, %v513
    %v540 = vadd.f32 %v476, %v515
    %v541 = vadd.f32 %v477, %v517
    %v542 = vadd.f32 %v478, %v519
    %v543 = vadd.f32 %v479, %v521
    %v544 = vadd.f32 %v480, %v523
    %v545 = vadd.f32 %v481, %v525
    %v546 = vadd.f32 %v482, %v527
    %v547 = vadd.f32 %v483, %v529
    %v548 = vadd.f32 %v484, %v531
    %v549 = vadd.f32 %v485, %v533
    %550 = vst.msk [vmem:[%s3] sm:$0xff] %vm434, %v534
    %551 = vst.msk [vmem:[%s3 + $0x8] sm:$0xff] %vm434, %v535
    %552 = vst.msk [vmem:[%s3 + $0x10] sm:$0xff] %vm434, %v536
    %553 = vst.msk [vmem:[%s3 + $0x18] sm:$0xff] %vm434, %v537
    %554 = vst.msk [vmem:[%s3 + $0x20] sm:$0xff] %vm434, %v538
    %555 = vst.msk [vmem:[%s3 + $0x28] sm:$0xff] %vm434, %v539
    %556 = vst.msk [vmem:[%s3 + $0x30] sm:$0xff] %vm434, %v540
    %557 = vst.msk [vmem:[%s3 + $0x38] sm:$0xff] %vm434, %v541
    %558 = vst.msk [vmem:[%s3 + $0x40] sm:$0xff] %vm434, %v542
    %559 = vst.msk [vmem:[%s3 + $0x48] sm:$0xff] %vm434, %v543
    %560 = vst.msk [vmem:[%s3 + $0x50] sm:$0xff] %vm434, %v544
    %561 = vst.msk [vmem:[%s3 + $0x58] sm:$0xff] %vm434, %v545
    %562 = vst.msk [vmem:[%s3 + $0x60] sm:$0xff] %vm434, %v546
    %563 = vst.msk [vmem:[%s3 + $0x68] sm:$0xff] %vm434, %v547
    %564 = vst.msk [vmem:[%s3 + $0x70] sm:$0xff] %vm434, %v548
    %565 = vst.msk [vmem:[%s3 + $0x78] sm:$0xff] %vm434, %v549
  $region17: #{tpu_custom_call.1} parent=0 // pred_fallthru
    _
  // Predicated region
  $region18: #{tpu_custom_call.1} parent=0 // pred_check
    _
  $region19: #{tpu_custom_call.1} parent=0 // pred_check_branch
    %567 = sbr.rel (0) target = $region21
  $region20: #{tpu_custom_call.1} parent=0 // pred_region
    _
  $region21: #{tpu_custom_call.1} parent=0 // pred_fallthru
    _
  // Predicated region
  $region22: #{tpu_custom_call.1} parent=0 // pred_check
    _
  $region23: #{tpu_custom_call.1} parent=0 // pred_check_branch
    %569 = sbr.rel (0) target = $region25
  $region24: #{tpu_custom_call.1} parent=0 // pred_region
    _
  $region25: #{tpu_custom_call.1} parent=0 // pred_fallthru
    _

</llo_original>
